<compile_context>
chip_gen: v7x
topology: tpu7x:2x2x1
jax: 0.10.0
libtpu: 0.0.40
codegen_flags: <defaults>
</compile_context>

<pallas_src>
import math
import functools

import jax
import jax.numpy as jnp
from jax import lax
from jax.experimental import pallas as pl
from jax.experimental.pallas import tpu as pltpu


# ---------------------------------------------------------------------------
# Positional encoding (same math as the PyTorch get_positional_encoding)
# ---------------------------------------------------------------------------
def get_positional_encoding(d_model: int, max_len: int = 5000) -> jnp.ndarray:
    position = jnp.arange(max_len, dtype=jnp.float32)[:, None]           # (max_len, 1)
    two_i = jnp.arange(0, d_model, 2, dtype=jnp.float32)                  # (d_model//2,)
    div_term = jnp.exp(two_i * -(math.log(10000.0) / d_model))
    angles = position * div_term                                          # (max_len, d_model//2)
    enc = jnp.zeros((max_len, d_model), dtype=jnp.float32)
    enc = enc.at[:, 0::2].set(jnp.sin(angles))
    enc = enc.at[:, 1::2].set(jnp.cos(angles))
    return enc[:, None, :]  # (max_len, 1, d_model) — matches the PyTorch buffer


# ---------------------------------------------------------------------------
# Pallas kernel: one row tile (TILE_R flattened (seq, batch) rows) per grid step
# ---------------------------------------------------------------------------
def _emb_pe_kernel(ids_ref, emb_ref, pe_ref, out_ref, *, scale):
    # ids_ref : VMEM (TILE_R, 1)       int32  flattened token ids for this tile
    # emb_ref : VMEM (V_pad, d_model)  f32    full (vocab-padded) table, resident
    # pe_ref  : VMEM (TILE_R, d_model) f32    per-row positional encodings
    # out_ref : VMEM (TILE_R, d_model) f32
    tile_r = ids_ref.shape[0]
    v_pad = emb_ref.shape[0]

    ids = ids_ref[...]                                                 # (TR, 1)
    vocab_iota = lax.broadcasted_iota(jnp.int32, (tile_r, v_pad), 1)   # (TR, Vp)
    onehot = (ids == vocab_iota).astype(emb_ref.dtype)                 # lane-broadcast compare

    # Vectorized gather: one-hot matmul on the MXU, f32 accumulation.
    rows = jnp.dot(onehot, emb_ref[...], preferred_element_type=jnp.float32)

    # Scale once on the gathered block, add PE as one full-tile VPU op.
    out_ref[...] = (rows * scale + pe_ref[...]).astype(out_ref.dtype)


def embeddings_with_positional_encoding(ids, emb_table, pe_full, *, tile_rows=1024):
    """ids: (seq_len, batch) int32 -> (seq_len, batch, d_model) float32."""
    seq_len, batch = ids.shape
    n_vocab, d_model = emb_table.shape
    scale = math.sqrt(d_model)

    # Pad the vocab (MXU contraction dim) to a multiple of 128; padded rows are
    # zero and are never selected by valid ids.
    v_pad = pl.cdiv(n_vocab, 128) * 128
    emb_p = emb_table if v_pad == n_vocab else jnp.pad(
        emb_table, ((0, v_pad - n_vocab), (0, 0)))

    # Flatten (seq, batch) -> rows; row r corresponds to seq position r // batch.
    rows = seq_len * batch
    ids_flat = ids.reshape(rows, 1).astype(jnp.int32)
    pe = pe_full[:seq_len, 0, :].astype(emb_table.dtype)               # (S, D)
    pe_rows = jnp.repeat(pe, batch, axis=0)                            # (S*B, D)

    # Pick a row tile: multiple of 8, as large as requested, pad rows to fit.
    tile_r = max(8, (min(tile_rows, rows) // 8) * 8)
    rows_pad = pl.cdiv(rows, tile_r) * tile_r
    if rows_pad != rows:
        ids_flat = jnp.pad(ids_flat, ((0, rows_pad - rows), (0, 0)))
        pe_rows = jnp.pad(pe_rows, ((0, rows_pad - rows), (0, 0)))

    kernel = functools.partial(_emb_pe_kernel, scale=scale)

    out2d = pl.pallas_call(
        kernel,
        out_shape=jax.ShapeDtypeStruct((rows_pad, d_model), emb_table.dtype),
        grid_spec=pltpu.PrefetchScalarGridSpec(
            num_scalar_prefetch=0,
            grid=(rows_pad // tile_r,),
            in_specs=[
                # token ids for this row tile
                pl.BlockSpec((tile_r, 1), lambda i: (i, 0)),
                # full (padded) embedding table, constant block -> DMA'd once
                pl.BlockSpec((v_pad, d_model), lambda i: (0, 0)),
                # per-row positional encodings for this row tile
                pl.BlockSpec((tile_r, d_model), lambda i: (i, 0)),
            ],
            out_specs=pl.BlockSpec((tile_r, d_model), lambda i: (i, 0)),
        ),
        compiler_params=pltpu.CompilerParams(
            dimension_semantics=("parallel",)),  # v7x: row tiles split across TCs
    )(ids_flat, emb_p, pe_rows)

    return out2d[:rows].reshape(seq_len, batch, d_model)


# ---------------------------------------------------------------------------
# Demo / self-check
# ---------------------------------------------------------------------------
if __name__ == "__main__":
    d_model = 128   # lane-dense output (multiple of 128)
    n_vocab = 64
    max_len = 64
    seq_len = 8
    batch = 8

    key = jax.random.PRNGKey(0)
    k_emb, k_ids = jax.random.split(key)

    emb_table = jax.random.normal(k_emb, (n_vocab, d_model), dtype=jnp.float32)
    pe_full = get_positional_encoding(d_model, max_len)  # (max_len, 1, d_model)
    ids = jax.random.randint(k_ids, (seq_len, batch), 0, n_vocab, dtype=jnp.int32)

    out = embeddings_with_positional_encoding(ids, emb_table, pe_full)
    out = jax.block_until_ready(out)

    # Pure-JAX reference for correctness.
    ref = jnp.take(emb_table, ids, axis=0) * math.sqrt(d_model) + pe_full[:seq_len]
    assert out.shape == (seq_len, batch, d_model)
    assert jnp.allclose(out, ref, atol=1e-3, rtol=1e-3), "mismatch vs reference"

    print("KERNEL_OK")
</pallas_src>

<mosaic_0001>
module attributes {stable_mosaic.version = 11 : i64} {
  func.func @_emb_pe_kernel(%arg0: i32, %arg1: memref<64x1xi32, #tpu.memory_space<vmem>>, %arg2: memref<128x128xf32, #tpu.memory_space<vmem>>, %arg3: memref<64x128xf32, #tpu.memory_space<vmem>>, %arg4: memref<64x128xf32, #tpu.memory_space<vmem>>) attributes {dimension_semantics = [#tpu.dimension_semantics<parallel>], iteration_bounds = array<i64: 1>, scalar_prefetch = 0 : i64, scratch_operands = 0 : i64, tpu.core_type = #tpu.core_type<tc>, window_params = [{transform_indices = @transform_0, window_bounds = array<i64: 64, 1>}, {pipeline_mode = #tpu.pipeline_mode<synchronous>, transform_indices = @transform_1, window_bounds = array<i64: 128, 128>}, {transform_indices = @transform_2, window_bounds = array<i64: 64, 128>}, {transform_indices = @transform_3, window_bounds = array<i64: 64, 128>}]} {
    %c0 = arith.constant 0 : index
    %c0_0 = arith.constant 0 : index
    %0 = vector.load %arg1[%c0, %c0_0] : memref<64x1xi32, #tpu.memory_space<vmem>>, vector<64x1xi32>
    %1 = tpu.iota {dimensions = array<i32: 1>} : vector<64x128xi32>
    %2 = vector.broadcast %0 : vector<64x1xi32> to vector<64x128xi32>
    %3 = arith.cmpi eq, %2, %1 : vector<64x128xi32>
    %4 = arith.extui %3 : vector<64x128xi1> to vector<64x128xi32>
    %5 = arith.sitofp %4 : vector<64x128xi32> to vector<64x128xf32>
    %c0_1 = arith.constant 0 : index
    %c0_2 = arith.constant 0 : index
    %6 = vector.load %arg2[%c0_1, %c0_2] : memref<128x128xf32, #tpu.memory_space<vmem>>, vector<128x128xf32>
    %cst = arith.constant dense<0.000000e+00> : vector<64x128xf32>
    %7 = tpu.matmul %5, %6, %cst {dimension_numbers = #tpu.dot_dimension_numbers<[1], [0], [0], [1], [0, 0, 1, 1], [], []>} : vector<64x128xf32>, vector<128x128xf32>, vector<64x128xf32> -> vector<64x128xf32>
    %cst_3 = arith.constant 11.3137083 : f32
    %8 = vector.broadcast %cst_3 : f32 to vector<64x128xf32>
    %9 = arith.mulf %7, %8 : vector<64x128xf32>
    %c0_4 = arith.constant 0 : index
    %c0_5 = arith.constant 0 : index
    %10 = vector.load %arg3[%c0_4, %c0_5] : memref<64x128xf32, #tpu.memory_space<vmem>>, vector<64x128xf32>
    %11 = arith.addf %9, %10 : vector<64x128xf32>
    %c0_6 = arith.constant 0 : index
    %c0_7 = arith.constant 0 : index
    %12 = vector.load %arg4[%c0_6, %c0_7] : memref<64x128xf32, #tpu.memory_space<vmem>>, vector<64x128xf32>
    tpu.vector_store %arg4[%c0_6, %c0_7], %11 {strides = array<i32>} : memref<64x128xf32, #tpu.memory_space<vmem>>, vector<64x128xf32>,
    return
  }
  func.func @transform_0(%arg0: i32) -> (i32, i32) {
    %c0_i32 = arith.constant 0 : i32
    %c0_i32_0 = arith.constant 0 : i32
    return %arg0, %c0_i32 : i32, i32
  }
  func.func @transform_1(%arg0: i32) -> (i32, i32) {
    %c0_i32 = arith.constant 0 : i32
    %c0_i32_0 = arith.constant 0 : i32
    %c0_i32_1 = arith.constant 0 : i32
    return %c0_i32, %c0_i32_0 : i32, i32
  }
  func.func @transform_2(%arg0: i32) -> (i32, i32) {
    %c0_i32 = arith.constant 0 : i32
    %c0_i32_0 = arith.constant 0 : i32
    return %arg0, %c0_i32 : i32, i32
  }
  func.func @transform_3(%arg0: i32) -> (i32, i32) {
    %c0_i32 = arith.constant 0 : i32
    %c0_i32_0 = arith.constant 0 : i32
    return %arg0, %c0_i32 : i32, i32
  }
}

</mosaic_0001>

<llo_original>
// kernel: tpu_custom_call.1
$region0: #{tpu_custom_call.1}
  #allocation0 [shape = 'u32[]', space=smem, size = 0x4, offset = 0x4, fixed_abs, tag = 'smem constant byte address 0x4 - core index']
  #allocation1 [shape = 'u32[144,128]{1,0:T(1,128)}', space=vmem, size = 0x12000, scoped, tag = 'internal scratch']
  %s0 = inlined_call_operand.vmem [shape: s32[64,1], index: 0, kind: input, shape index: {}]
  %s1 = inlined_call_operand.hbm [shape: f32[128,128], index: 1, kind: input, shape index: {}]
  %s2 = inlined_call_operand.vmem [shape: f32[64,128], index: 2, kind: input, shape index: {}]
  %s3 = inlined_call_operand.hbm [shape: f32[64,128], index: 3, kind: output, shape index: {}]
  %s4 = sld [smem:[#allocation0]]
  $region26: #{tpu_custom_call.1} parent=0
    _
  %s6 = ssub.s32 1, %s4
  %s7 = scalar_select 0, %s6, %s4
  $region1: #{tpu_custom_call.1} parent=0
    #allocation2 [shape = 'u8[65536]{0}', space=vmem, size = 0x10000, scoped, tag = 'input window, operand 1, single buffered']
    #allocation3 [shape = 's32[1]{0}', space=sflag, size = 0x4, scoped, tag = 'scoped memory for tpu_custom_call.1']
    #allocation4 [shape = 's32[1]{0}', space=sflag, size = 0x4, scoped, tag = 'scoped memory for tpu_custom_call.1']
    #allocation5 [shape = 'u8[32768]{0}', space=vmem, size = 0x8000, scoped, tag = 'output window, operand 0, single buffered']
    %8 = vsyncpa [#allocation3], 0
    %9 = vsyncpa [#allocation4], 0
    // Predicated region
    $region2: #{tpu_custom_call.1} parent=1 // pred_check
      _
    $region3: #{tpu_custom_call.1} parent=1 // pred_check_branch
      %11 = sbr.rel (0) target = $region5
    $region4: #{tpu_custom_call.1} parent=1 // pred_region
      _
    $region5: #{tpu_custom_call.1} parent=1 // pred_fallthru
      _
    // Predicated region
    $region6: #{tpu_custom_call.1} parent=1 // pred_check
      _
    $region7: #{tpu_custom_call.1} parent=1 // pred_check_branch
      %13 = sbr.rel (0) target = $region9
    $region8: #{tpu_custom_call.1} parent=1 // pred_region
      %s15 = ssub.s32 2048, 2048
      %16 = vsyncadd [#allocation3], %s15
      %s17 = sshll.u32 [#allocation2], 4
      %s18 = int_to_ptr.vmem [resolvable:$true] %s17
      %23 = dma.hbm_to_vmem [thread:$0]  %s1, 2048, %s18, [#allocation3], 128, 128, 8
    $region9: #{tpu_custom_call.1} parent=1 // pred_fallthru
      _
    // Predicated region
    $region10: #{tpu_custom_call.1} parent=1 // pred_check
      _
    $region11: #{tpu_custom_call.1} parent=1 // pred_check_branch
      %25 = sbr.rel (0) target = $region13
    $region12: #{tpu_custom_call.1} parent=1 // pred_region
      _
    $region13: #{tpu_custom_call.1} parent=1 // pred_fallthru
      _
    // Predicated region
    $region14: #{tpu_custom_call.1} parent=1 // pred_check
      _
    $region15: #{tpu_custom_call.1} parent=1 // pred_check_branch
      %27 = sbr.rel (0) target = $region17
    $region16: #{tpu_custom_call.1} parent=1 // pred_region
      %28 = dma.done [#allocation3], 2048
    $region17: #{tpu_custom_call.1} parent=1 // pred_fallthru
      _
    %v29 = vld [vmem:[%s0] sm:$0xff]
    %v30 = vld [vmem:[%s0 + $0x8] sm:$0xff]
    %v31 = vld [vmem:[%s0 + $0x10] sm:$0xff]
    %v32 = vld [vmem:[%s0 + $0x18] sm:$0xff]
    %v33 = vld [vmem:[%s0 + $0x20] sm:$0xff]
    %v34 = vld [vmem:[%s0 + $0x28] sm:$0xff]
    %v35 = vld [vmem:[%s0 + $0x30] sm:$0xff]
    %v36 = vld [vmem:[%s0 + $0x38] sm:$0xff]
    %v37 = vlaneseq
    %v38 = vand.u32 %v37, 127
    %39 = vset.pattern.permute.xlu0 0
    %40 = vperm.xlu0 %39, %v29
    %v41 = vpop.permute.xlu0 %40
    %42 = vset.pattern.permute.xlu0 0
    %43 = vperm.xlu0 %42, %v30
    %v44 = vpop.permute.xlu0 %43
    %45 = vset.pattern.permute.xlu0 0
    %46 = vperm.xlu0 %45, %v31
    %v47 = vpop.permute.xlu0 %46
    %48 = vset.pattern.permute.xlu0 0
    %49 = vperm.xlu0 %48, %v32
    %v50 = vpop.permute.xlu0 %49
    %51 = vset.pattern.permute.xlu0 0
    %52 = vperm.xlu0 %51, %v33
    %v53 = vpop.permute.xlu0 %52
    %54 = vset.pattern.permute.xlu0 0
    %55 = vperm.xlu0 %54, %v34
    %v56 = vpop.permute.xlu0 %55
    %57 = vset.pattern.permute.xlu0 0
    %58 = vperm.xlu0 %57, %v35
    %v59 = vpop.permute.xlu0 %58
    %60 = vset.pattern.permute.xlu0 0
    %61 = vperm.xlu0 %60, %v36
    %v62 = vpop.permute.xlu0 %61
    %vm63 = vcmp.eq.s32.totalorder %v41, %v38
    %vm64 = vcmp.eq.s32.totalorder %v44, %v38
    %vm65 = vcmp.eq.s32.totalorder %v47, %v38
    %vm66 = vcmp.eq.s32.totalorder %v50, %v38
    %vm67 = vcmp.eq.s32.totalorder %v53, %v38
    %vm68 = vcmp.eq.s32.totalorder %v56, %v38
    %vm69 = vcmp.eq.s32.totalorder %v59, %v38
    %vm70 = vcmp.eq.s32.totalorder %v62, %v38
    %v71 = vsel %vm63, 1, 0
    %v72 = vsel %vm64, 1, 0
    %v73 = vsel %vm65, 1, 0
    %v74 = vsel %vm66, 1, 0
    %v75 = vsel %vm67, 1, 0
    %v76 = vsel %vm68, 1, 0
    %v77 = vsel %vm69, 1, 0
    %v78 = vsel %vm70, 1, 0
    %v79 = vcvt.s32.f32 %v71
    %v80 = vcvt.s32.f32 %v72
    %v81 = vcvt.s32.f32 %v73
    %v82 = vcvt.s32.f32 %v74
    %v83 = vcvt.s32.f32 %v75
    %v84 = vcvt.s32.f32 %v76
    %v85 = vcvt.s32.f32 %v77
    %v86 = vcvt.s32.f32 %v78
    %v87 = vld [vmem:[#allocation2] sm:$0xff]
    %v88 = vld [vmem:[#allocation2 + $0x8] sm:$0xff]
    %v89 = vld [vmem:[#allocation2 + $0x10] sm:$0xff]
    %v90 = vld [vmem:[#allocation2 + $0x18] sm:$0xff]
    %v91 = vld [vmem:[#allocation2 + $0x20] sm:$0xff]
    %v92 = vld [vmem:[#allocation2 + $0x28] sm:$0xff]
    %v93 = vld [vmem:[#allocation2 + $0x30] sm:$0xff]
    %v94 = vld [vmem:[#allocation2 + $0x38] sm:$0xff]
    %v95 = vld [vmem:[#allocation2 + $0x40] sm:$0xff]
    %v96 = vld [vmem:[#allocation2 + $0x48] sm:$0xff]
    %v97 = vld [vmem:[#allocation2 + $0x50] sm:$0xff]
    %v98 = vld [vmem:[#allocation2 + $0x58] sm:$0xff]
    %v99 = vld [vmem:[#allocation2 + $0x60] sm:$0xff]
    %v100 = vld [vmem:[#allocation2 + $0x68] sm:$0xff]
    %v101 = vld [vmem:[#allocation2 + $0x70] sm:$0xff]
    %v102 = vld [vmem:[#allocation2 + $0x78] sm:$0xff]
    %103 = vmatprep.subr.mxu0 0.0
    %104 = vmatpush1.msra.mxu0 %v87
    %105 = vmatprep.subr.mxu0 0.0
    %106 = vmatpush1.msra.mxu0 %v88
    %107 = vmatprep.subr.mxu0 0.0
    %108 = vmatpush1.msra.mxu0 %v89
    %109 = vmatprep.subr.mxu0 0.0
    %110 = vmatpush1.msra.mxu0 %v90
    %111 = vmatprep.subr.mxu0 0.0
    %112 = vmatpush1.msra.mxu0 %v91
    %113 = vmatprep.subr.mxu0 0.0
    %114 = vmatpush1.msra.mxu0 %v92
    %115 = vmatprep.subr.mxu0 0.0
    %116 = vmatpush1.msra.mxu0 %v93
    %117 = vmatprep.subr.mxu0 0.0
    %118 = vmatpush1.msra.mxu0 %v94
    %119 = vmatprep.subr.mxu0 0.0
    %120 = vmatpush1.msra.mxu0 %v95
    %121 = vmatprep.subr.mxu0 0.0
    %122 = vmatpush1.msra.mxu0 %v96
    %123 = vmatprep.subr.mxu0 0.0
    %124 = vmatpush1.msra.mxu0 %v97
    %125 = vmatprep.subr.mxu0 0.0
    %126 = vmatpush1.msra.mxu0 %v98
    %127 = vmatprep.subr.mxu0 0.0
    %128 = vmatpush1.msra.mxu0 %v99
    %129 = vmatprep.subr.mxu0 0.0
    %130 = vmatpush1.msra.mxu0 %v100
    %131 = vmatprep.subr.mxu0 0.0
    %132 = vmatpush1.msra.mxu0 %v101
    %133 = vmatprep.subr.mxu0 0.0
    %134 = vmatpush1.msra.mxu0 %v102
    %135 = vmatprep.subr.mxu0 0.0
    %136 = vmatpush1.msra.mxu0 0.0
    %137 = vmatprep.subr.mxu0 0.0
    %138 = vmatpush1.msra.mxu0 0.0
    %139 = vmatprep.subr.mxu0 0.0
    %140 = vmatpush1.msra.mxu0 0.0
    %141 = vmatprep.subr.mxu0 0.0
    %142 = vmatpush1.msra.mxu0 0.0
    %143 = vmatprep.subr.mxu0 0.0
    %144 = vmatpush1.msra.mxu0 0.0
    %145 = vmatprep.subr.mxu0 0.0
    %146 = vmatpush1.msra.mxu0 0.0
    %147 = vmatprep.subr.mxu0 0.0
    %148 = vmatpush1.msra.mxu0 0.0
    %149 = vmatprep.subr.mxu0 0.0
    %150 = vmatpush1.msra.mxu0 0.0
    %151 = vmatprep.subr.mxu0 0.0
    %152 = vmatpush1.msra.mxu0 0.0
    %153 = vmatprep.subr.mxu0 0.0
    %154 = vmatpush1.msra.mxu0 0.0
    %155 = vmatprep.subr.mxu0 0.0
    %156 = vmatpush1.msra.mxu0 0.0
    %157 = vmatprep.subr.mxu0 0.0
    %158 = vmatpush1.msra.mxu0 0.0
    %159 = vmatprep.subr.mxu0 0.0
    %160 = vmatpush1.msra.mxu0 0.0
    %161 = vmatprep.subr.mxu0 0.0
    %162 = vmatpush1.msra.mxu0 0.0
    %163 = vmatprep.subr.mxu0 0.0
    %164 = vmatpush1.msra.mxu0 0.0
    %165 = vmatprep.subr.mxu0 0.0
    %166 = vmatpush1.msra.mxu0 0.0
    %167 = vmatprep.mubr.f32.mxu0 0.0
    %168 = vmatmul.mubr.f32.gmra.mrb[0].mxu0 %v79
    %v169 = vpop.f32.mrb[0].mxu0
    %v170 = vadd.f32 0.0, %v169
    %v171 = vpop.f32.mrb[0].mxu0
    %172 = vmatprep.mubr.f32.mxu0 0.0
    %173 = vmatmul.mubr.f32.gmra.mrb[0].mxu0 %v80
    %v174 = vpop.f32.mrb[0].mxu0
    %v175 = vadd.f32 0.0, %v174
    %v176 = vpop.f32.mrb[0].mxu0
    %177 = vmatprep.mubr.f32.mxu0 0.0
    %178 = vmatmul.mubr.f32.gmra.mrb[0].mxu0 %v81
    %v179 = vpop.f32.mrb[0].mxu0
    %v180 = vadd.f32 0.0, %v179
    %v181 = vpop.f32.mrb[0].mxu0
    %182 = vmatprep.mubr.f32.mxu0 0.0
    %183 = vmatmul.mubr.f32.gmra.mrb[0].mxu0 %v82
    %v184 = vpop.f32.mrb[0].mxu0
    %v185 = vadd.f32 0.0, %v184
    %v186 = vpop.f32.mrb[0].mxu0
    %187 = vmatprep.mubr.f32.mxu0 0.0
    %188 = vmatmul.mubr.f32.gmra.mrb[0].mxu0 %v83
    %v189 = vpop.f32.mrb[0].mxu0
    %v190 = vadd.f32 0.0, %v189
    %v191 = vpop.f32.mrb[0].mxu0
    %192 = vmatprep.mubr.f32.mxu0 0.0
    %193 = vmatmul.mubr.f32.gmra.mrb[0].mxu0 %v84
    %v194 = vpop.f32.mrb[0].mxu0
    %v195 = vadd.f32 0.0, %v194
    %v196 = vpop.f32.mrb[0].mxu0
    %197 = vmatprep.mubr.f32.mxu0 0.0
    %198 = vmatmul.mubr.f32.gmra.mrb[0].mxu0 %v85
    %v199 = vpop.f32.mrb[0].mxu0
    %v200 = vadd.f32 0.0, %v199
    %v201 = vpop.f32.mrb[0].mxu0
    %202 = vmatprep.mubr.f32.mxu0 0.0
    %203 = vmatmul.mubr.f32.gmra.mrb[0].mxu0 %v86
    %v204 = vpop.f32.mrb[0].mxu0
    %v205 = vadd.f32 0.0, %v204
    %v206 = vpop.f32.mrb[0].mxu0
    %207 = vdwg.mxu0
    %v208 = vmul.f32 %v170, 11.313708
    %v209 = vmul.f32 %v175, 11.313708
    %v210 = vmul.f32 %v180, 11.313708
    %v211 = vmul.f32 %v185, 11.313708
    %v212 = vmul.f32 %v190, 11.313708
    %v213 = vmul.f32 %v195, 11.313708
    %v214 = vmul.f32 %v200, 11.313708
    %v215 = vmul.f32 %v205, 11.313708
    %v216 = vld [vmem:[%s2] sm:$0xff]
    %v217 = vld [vmem:[%s2 + $0x8] sm:$0xff]
    %v218 = vld [vmem:[%s2 + $0x10] sm:$0xff]
    %v219 = vld [vmem:[%s2 + $0x18] sm:$0xff]
    %v220 = vld [vmem:[%s2 + $0x20] sm:$0xff]
    %v221 = vld [vmem:[%s2 + $0x28] sm:$0xff]
    %v222 = vld [vmem:[%s2 + $0x30] sm:$0xff]
    %v223 = vld [vmem:[%s2 + $0x38] sm:$0xff]
    %v224 = vadd.f32 %v208, %v216
    %v225 = vadd.f32 %v209, %v217
    %v226 = vadd.f32 %v210, %v218
    %v227 = vadd.f32 %v211, %v219
    %v228 = vadd.f32 %v212, %v220
    %v229 = vadd.f32 %v213, %v221
    %v230 = vadd.f32 %v214, %v222
    %v231 = vadd.f32 %v215, %v223
    %232 = vst [vmem:[#allocation5] sm:$0xff] %v224
    %233 = vst [vmem:[#allocation5 + $0x8] sm:$0xff] %v225
    %234 = vst [vmem:[#allocation5 + $0x10] sm:$0xff] %v226
    %235 = vst [vmem:[#allocation5 + $0x18] sm:$0xff] %v227
    %236 = vst [vmem:[#allocation5 + $0x20] sm:$0xff] %v228
    %237 = vst [vmem:[#allocation5 + $0x28] sm:$0xff] %v229
    %238 = vst [vmem:[#allocation5 + $0x30] sm:$0xff] %v230
    %239 = vst [vmem:[#allocation5 + $0x38] sm:$0xff] %v231
    // Predicated region
    $region18: #{tpu_custom_call.1} parent=1 // pred_check
      _
    $region19: #{tpu_custom_call.1} parent=1 // pred_check_branch
      %241 = sbr.rel (0) target = $region21
    $region20: #{tpu_custom_call.1} parent=1 // pred_region
      %s243 = ssub.s32 1024, 1024
      %244 = vsyncadd [#allocation4], %s243
      %s245 = sshll.u32 [#allocation5], 4
      %s246 = int_to_ptr.vmem [resolvable:$true] %s245
      %251 = dma.vmem_to_hbm [thread:$0]  %s246, 1024, %s3, [#allocation4], 128, 128, 8
    $region21: #{tpu_custom_call.1} parent=1 // pred_fallthru
      _
    // Predicated region
    $region22: #{tpu_custom_call.1} parent=1 // pred_check
      _
    $region23: #{tpu_custom_call.1} parent=1 // pred_check_branch
      %253 = sbr.rel (0) target = $region25
    $region24: #{tpu_custom_call.1} parent=1 // pred_region
      %254 = dma.done [#allocation4], 1024
    $region25: #{tpu_custom_call.1} parent=1 // pred_fallthru
      _
    %255 = vsyncpa [#allocation3], 1
    %256 = vsyncpa [#allocation4], 1

</llo_original>
